<compile_context>
chip_gen: v5e
topology: v5e:2x2
jax: 0.10.0
libtpu: 0.0.40
codegen_flags: <defaults>
</compile_context>

<pallas_src>
import functools

import jax
import jax.numpy as jnp
from jax.experimental import pallas as pl
from jax.experimental.pallas import tpu as pltpu


def _h_swish_kernel(x_ref, o_ref, *, compute_dtype):
    x = x_ref[...].astype(compute_dtype)
    three = jnp.asarray(3.0, compute_dtype)
    zero = jnp.asarray(0.0, compute_dtype)
    six = jnp.asarray(6.0, compute_dtype)
    inv6 = jnp.asarray(1.0 / 6.0, compute_dtype)
    hs = jnp.clip(x + three, zero, six)
    o_ref[...] = (x * hs * inv6).astype(o_ref.dtype)


def _compute_dtype(dtype):
    if dtype == jnp.float32:
        return jnp.float32
    if dtype == jnp.bfloat16:
        try:
            kind = jax.devices()[0].device_kind.lower()
        except Exception:
            kind = ""
        # v6e / v7x VPUs are bf16-capable; older generations need the f32 path.
        if ("v6" in kind) or ("v7" in kind):
            return jnp.bfloat16
        return jnp.float32
    return jnp.float32


_LANE_CANDIDATES = (4096, 2048, 1024, 512, 256, 128)
_TARGET_BLOCK_BYTES = 4 * 1024 * 1024   # ~4 MiB per block
_VMEM_LIMIT_BYTES = 32 * 1024 * 1024    # fits v5e/v6e/v7x physical VMEM


def h_swish(x):
    """Elementwise hard-swish via a Pallas TPU kernel. x: any shape (e.g. NCHW)."""
    orig_shape = x.shape
    dtype = x.dtype
    n_elems = x.size
    itemsize = jnp.dtype(dtype).itemsize

    flat = x.reshape(-1)

    # Pick the largest lane width (multiple of 128) that divides the element
    # count -> no padding needed for typical conv activation sizes.
    lane = next((l for l in _LANE_CANDIDATES if n_elems % l == 0), None)
    padded_elems = n_elems
    if lane is None:
        # Rare fallback: pad once to a (8,128)-tile multiple, slice once at end.
        lane = 128
        padded_elems = pl.cdiv(n_elems, 8 * lane) * (8 * lane)
        flat = jnp.pad(flat, (0, padded_elems - n_elems))

    rows = padded_elems // lane

    # Block rows: ~4 MiB per block, multiple of 8 (or the full row extent).
    tr = max(8, (_TARGET_BLOCK_BYTES // (lane * itemsize)) // 8 * 8)
    if tr >= rows:
        tr = rows
    grid_rows = pl.cdiv(rows, tr)

    x2d = flat.reshape(rows, lane)
    kernel = functools.partial(_h_swish_kernel, compute_dtype=_compute_dtype(dtype))

    out2d = pl.pallas_call(
        kernel,
        out_shape=jax.ShapeDtypeStruct((rows, lane), dtype),
        grid_spec=pltpu.PrefetchScalarGridSpec(
            num_scalar_prefetch=0,
            grid=(grid_rows,),
            in_specs=[pl.BlockSpec((tr, lane), lambda i: (i, 0))],
            out_specs=pl.BlockSpec((tr, lane), lambda i: (i, 0)),
        ),
        compiler_params=pltpu.CompilerParams(
            dimension_semantics=("parallel",),
            vmem_limit_bytes=_VMEM_LIMIT_BYTES,
        ),
    )(x2d)

    if padded_elems != n_elems:
        return out2d.reshape(-1)[:n_elems].reshape(orig_shape)
    return out2d.reshape(orig_shape)


def h_swish_ref(x):
    xf = x.astype(jnp.float32)
    return (xf * jnp.clip(xf + 3.0, 0.0, 6.0) * (1.0 / 6.0)).astype(x.dtype)


if __name__ == "__main__":
    key = jax.random.PRNGKey(0)

    # Small NCHW input consistent with the module's usage.
    x = jax.random.normal(key, (2, 4, 16, 16), dtype=jnp.float32) * 4.0
    y = jax.block_until_ready(h_swish(x))
    y_ref = h_swish_ref(x)
    assert y.shape == x.shape and y.dtype == x.dtype
    assert jnp.allclose(y, y_ref, atol=1e-6, rtol=1e-6), "mismatch vs reference"

    # Exercise the non-128-divisible fallback (pad-once) path as well.
    x_odd = jax.random.normal(jax.random.PRNGKey(1), (1, 3, 5, 7), dtype=jnp.float32) * 4.0
    y_odd = jax.block_until_ready(h_swish(x_odd))
    assert y_odd.shape == x_odd.shape
    assert jnp.allclose(y_odd, h_swish_ref(x_odd), atol=1e-6, rtol=1e-6), "mismatch (odd shape)"

    print("KERNEL_OK")
</pallas_src>

<mosaic_0001>
module attributes {stable_mosaic.version = 11 : i64} {
  func.func @_h_swish_kernel(%arg0: i32, %arg1: memref<1x2048xf32, #tpu.memory_space<vmem>>, %arg2: memref<1x2048xf32, #tpu.memory_space<vmem>>) attributes {dimension_semantics = [#tpu.dimension_semantics<parallel>], iteration_bounds = array<i64: 1>, scalar_prefetch = 0 : i64, scratch_operands = 0 : i64, tpu.core_type = #tpu.core_type<tc>, window_params = [{transform_indices = @transform_0, window_bounds = array<i64: 1, 2048>}, {transform_indices = @transform_1, window_bounds = array<i64: 1, 2048>}]} {
    %c0 = arith.constant 0 : index
    %c0_0 = arith.constant 0 : index
    %0 = vector.load %arg1[%c0, %c0_0] : memref<1x2048xf32, #tpu.memory_space<vmem>>, vector<1x2048xf32>
    %cst = arith.constant 3.000000e+00 : f32
    %1 = vector.broadcast %cst : f32 to vector<1x2048xf32>
    %2 = arith.addf %0, %1 : vector<1x2048xf32>
    %cst_1 = arith.constant 0.000000e+00 : f32
    %cst_2 = arith.constant 6.000000e+00 : f32
    %3 = vector.broadcast %cst_1 : f32 to vector<1x2048xf32>
    %4 = arith.maximumf %3, %2 : vector<1x2048xf32>
    %5 = vector.broadcast %cst_2 : f32 to vector<1x2048xf32>
    %6 = arith.minimumf %5, %4 : vector<1x2048xf32>
    %7 = arith.mulf %0, %6 : vector<1x2048xf32>
    %cst_3 = arith.constant 0.166666672 : f32
    %8 = vector.broadcast %cst_3 : f32 to vector<1x2048xf32>
    %9 = arith.mulf %7, %8 : vector<1x2048xf32>
    %c0_4 = arith.constant 0 : index
    %c0_5 = arith.constant 0 : index
    %10 = vector.load %arg2[%c0_4, %c0_5] : memref<1x2048xf32, #tpu.memory_space<vmem>>, vector<1x2048xf32>
    tpu.vector_store %arg2[%c0_4, %c0_5], %9 {strides = array<i32>} : memref<1x2048xf32, #tpu.memory_space<vmem>>, vector<1x2048xf32>,
    return
  }
  func.func @transform_0(%arg0: i32) -> (i32, i32) {
    %c0_i32 = arith.constant 0 : i32
    %c0_i32_0 = arith.constant 0 : i32
    return %arg0, %c0_i32 : i32, i32
  }
  func.func @transform_1(%arg0: i32) -> (i32, i32) {
    %c0_i32 = arith.constant 0 : i32
    %c0_i32_0 = arith.constant 0 : i32
    return %arg0, %c0_i32 : i32, i32
  }
}

</mosaic_0001>

<llo_original>
// kernel: tpu_custom_call.1
$region0: #{tpu_custom_call.1}
  #allocation0 [shape = 'u32[]', space=smem, size = 0x4, offset = 0x4, fixed_abs, tag = 'smem constant byte address 0x4 - core index']
  #allocation1 [shape = 'u32[72,128]{1,0:T(1,128)}', space=vmem, size = 0x9000, scoped, tag = 'internal scratch']
  %s0 = inlined_call_operand.hbm [shape: f32[1,2048], index: 0, kind: input, shape index: {}]
  %s1 = inlined_call_operand.hbm [shape: f32[1,2048], index: 1, kind: output, shape index: {}]
  %s2 = sld [smem:[#allocation0]]
  $region18: #{tpu_custom_call.1} parent=0
    _
  %s4 = ssub.s32 1, %s2
  %s5 = scalar_select 0, %s4, %s2
  $region1: #{tpu_custom_call.1} parent=0
    #allocation2 [shape = 'u8[8192]{0}', space=vmem, size = 0x2000, scoped, tag = 'input window, operand 0, single buffered']
    #allocation3 [shape = 's32[1]{0}', space=sflag, size = 0x4, scoped, tag = 'scoped memory for tpu_custom_call.1']
    #allocation4 [shape = 's32[1]{0}', space=sflag, size = 0x4, scoped, tag = 'scoped memory for tpu_custom_call.1']
    #allocation5 [shape = 'u8[8192]{0}', space=vmem, size = 0x2000, scoped, tag = 'output window, operand 0, single buffered']
    %6 = vsyncpa [#allocation3], 0
    %7 = vsyncpa [#allocation4], 0
    // Predicated region
    $region2: #{tpu_custom_call.1} parent=1 // pred_check
      _
    $region3: #{tpu_custom_call.1} parent=1 // pred_check_branch
      %9 = sbr.rel (0) target = $region5
    $region4: #{tpu_custom_call.1} parent=1 // pred_region
      %11 = vsyncadd [#allocation3], 0
      %s13 = sshll.u32 %s0, 4
      %s14 = int_to_ptr.hbm [resolvable:$true] %s13
      %s15 = sshll.u32 [#allocation2], 4
      %s16 = int_to_ptr.vmem [resolvable:$true] %s15
      %18 = dma.hbm_to_vmem [thread:$0]  %s14, 256, %s16, [#allocation3]
    $region5: #{tpu_custom_call.1} parent=1 // pred_fallthru
      _
    // Predicated region
    $region6: #{tpu_custom_call.1} parent=1 // pred_check
      _
    $region7: #{tpu_custom_call.1} parent=1 // pred_check_branch
      %20 = sbr.rel (0) target = $region9
    $region8: #{tpu_custom_call.1} parent=1 // pred_region
      %22 = dma.done [#allocation3], 256
    $region9: #{tpu_custom_call.1} parent=1 // pred_fallthru
      _
    %v23 = vld [vmem:[#allocation2] sm:$0xff]
    %v24 = vld [vmem:[#allocation2 + $0x8] sm:$0xff]
    %v25 = vadd.f32 %v23, 3.0
    %v26 = vadd.f32 %v24, 3.0
    %v27 = vmax.f32 %v25, 0.0
    %v28 = vmax.f32 %v26, 0.0
    %v29 = vmin.f32 %v27, 6.0
    %v30 = vmin.f32 %v28, 6.0
    %v31 = vmul.f32 %v23, %v29
    %v32 = vmul.f32 %v24, %v30
    %v33 = vmul.f32 %v31, 0.16666667
    %v34 = vmul.f32 %v32, 0.16666667
    %35 = vst [vmem:[#allocation5] sm:$0xff] %v33
    %36 = vst [vmem:[#allocation5 + $0x8] sm:$0xff] %v34
    // Predicated region
    $region10: #{tpu_custom_call.1} parent=1 // pred_check
      _
    $region11: #{tpu_custom_call.1} parent=1 // pred_check_branch
      %38 = sbr.rel (0) target = $region13
    $region12: #{tpu_custom_call.1} parent=1 // pred_region
      %40 = vsyncadd [#allocation4], 0
      %s42 = sshll.u32 [#allocation5], 4
      %s43 = int_to_ptr.vmem [resolvable:$true] %s42
      %s44 = sshll.u32 %s1, 4
      %s45 = int_to_ptr.hbm [resolvable:$true] %s44
      %47 = dma.vmem_to_hbm [thread:$0]  %s43, 256, %s45, [#allocation4]
    $region13: #{tpu_custom_call.1} parent=1 // pred_fallthru
      _
    // Predicated region
    $region14: #{tpu_custom_call.1} parent=1 // pred_check
      _
    $region15: #{tpu_custom_call.1} parent=1 // pred_check_branch
      %49 = sbr.rel (0) target = $region17
    $region16: #{tpu_custom_call.1} parent=1 // pred_region
      %51 = dma.done [#allocation4], 256
    $region17: #{tpu_custom_call.1} parent=1 // pred_fallthru
      _
    %52 = vsyncpa [#allocation3], 1
    %53 = vsyncpa [#allocation4], 1

</llo_original>
